<compile_context>
chip_gen: v7x
topology: tpu7x:2x2x1
jax: 0.10.0
libtpu: 0.0.40
codegen_flags: <defaults>
</compile_context>

<pallas_src>
import jax
import jax.numpy as jnp
from jax.experimental import pallas as pl
from jax.experimental.pallas import tpu as pltpu


HIDDEN = 15
HIDDEN_PAD = 16          # pad hidden dim to 16 sublanes; padded row has zero weights/bias
BN_CAP = 32768           # max batch-tile (lanes) per grid step; multiple of 128


def net_kernel(p_ref, x_ref, o_ref):
    # Parameter slab columns: 0=w1[0,:], 1=w1[1,:], 2=b1, 3=w2d, [0,4]=b2d (rows 15.. are 0).
    w10 = p_ref[:, 0:1]              # (16, 1)
    w11 = p_ref[:, 1:2]              # (16, 1)
    b1 = p_ref[:, 2:3]               # (16, 1)
    w2d = p_ref[:, 3:4]              # (16, 1)
    b2d = p_ref[0:1, 4:5]            # (1, 1)

    x0 = x_ref[0:1, :]               # (1, bn)  feature 0 across lanes
    x1 = x_ref[1:2, :]               # (1, bn)  feature 1 across lanes

    # ---- Linear(2, 15) + ReLU: two broadcast FMAs on the VPU, lane-dense (16, bn) ----
    # Padded hidden row 15 has w=0, b=0 -> relu(0) = 0, contributes nothing below.
    h = jnp.maximum(w10 * x0 + w11 * x1 + b1, 0.0)                   # (16, bn)

    # ---- Linear(15, 2) + Softmax(dim=1) via 2-class sigmoid of the logit difference ----
    # d = logit0 - logit1 = h @ (w2[:,0]-w2[:,1]) + (b2[0]-b2[1]); sublane reduce (XLU).
    d = jnp.sum(w2d * h, axis=0, keepdims=True) + b2d                # (1, bn)
    # sigmoid(d) in tanh form (EUP); p0 + p1 == 1 exactly.
    p0 = 0.5 * (jnp.tanh(0.5 * d) + 1.0)                             # (1, bn)

    # Two plain sublane-row stores into the lane-dense (2, bn) output tile.
    o_ref[0:1, :] = p0
    o_ref[1:2, :] = 1.0 - p0


def pack_params(w1, b1, w2, b2):
    """Pack all weights/biases into one resident (16, 8) f32 slab (single DMA)."""
    w2d = w2[:, 0] - w2[:, 1]                     # (15,)
    b2d = b2[0, 0] - b2[0, 1]                     # scalar
    slab = jnp.zeros((HIDDEN_PAD, 8), jnp.float32)
    slab = slab.at[:HIDDEN, 0].set(w1[0, :])      # weights: input feature 0 -> hidden
    slab = slab.at[:HIDDEN, 1].set(w1[1, :])      # weights: input feature 1 -> hidden
    slab = slab.at[:HIDDEN, 2].set(b1[0, :])      # hidden bias
    slab = slab.at[:HIDDEN, 3].set(w2d)           # logit-difference weights
    slab = slab.at[0, 4].set(b2d)                 # logit-difference bias
    return slab


def net_forward(x, w1, b1, w2, b2, *, bn_cap=BN_CAP):
    """softmax(relu(x @ w1 + b1) @ w2 + b2, axis=1) for x of shape (N, 2)."""
    N, F = x.shape
    assert F == 2
    params = pack_params(w1, b1, w2, b2)

    # Lane-dense layout: batch along lanes.
    xt = x.T.astype(jnp.float32)                  # (2, N)

    if N <= bn_cap:
        bn, n_pad = N, N                          # single grid step, block == full array
    else:
        bn = bn_cap                               # multiple of 128 -> valid lane tiling
        n_pad = -(-N // bn) * bn
        xt = jnp.pad(xt, ((0, 0), (0, n_pad - N)))  # ragged batch handled by zero-padding
    n_steps = n_pad // bn

    # Megacore sharding only when there is real work to split (v7x: both TCs engaged).
    dim_sem = ("parallel",) if n_steps > 1 else ("arbitrary",)

    out_t = pl.pallas_call(
        net_kernel,
        out_shape=jax.ShapeDtypeStruct((2, n_pad), jnp.float32),
        grid_spec=pltpu.PrefetchScalarGridSpec(
            num_scalar_prefetch=0,
            grid=(n_steps,),
            in_specs=[
                pl.BlockSpec((HIDDEN_PAD, 8), lambda i: (0, 0)),   # param slab (resident)
                pl.BlockSpec((2, bn), lambda i: (0, i)),           # x tile, lane-dense
            ],
            out_specs=pl.BlockSpec((2, bn), lambda i: (0, i)),     # out tile, lane-dense
        ),
        compiler_params=pltpu.CompilerParams(dimension_semantics=dim_sem),
    )(params, xt)

    return out_t[:, :N].T                          # back to (N, 2)


def init_params(key):
    # Mimic PyTorch nn.Linear default init: U(-1/sqrt(fan_in), 1/sqrt(fan_in)).
    k1, k2, k3, k4 = jax.random.split(key, 4)
    lim1 = 1.0 / jnp.sqrt(2.0)
    lim2 = 1.0 / jnp.sqrt(15.0)
    w1 = jax.random.uniform(k1, (2, HIDDEN), jnp.float32, -lim1, lim1)   # (in, out)
    b1 = jax.random.uniform(k2, (1, HIDDEN), jnp.float32, -lim1, lim1)
    w2 = jax.random.uniform(k3, (HIDDEN, 2), jnp.float32, -lim2, lim2)
    b2 = jax.random.uniform(k4, (1, 2), jnp.float32, -lim2, lim2)
    return w1, b1, w2, b2


if __name__ == "__main__":
    key = jax.random.PRNGKey(0)
    kx0, kx1, kp = jax.random.split(key, 3)

    # Data generation mirroring the module: two 100-point clusters around +2 and -2 in R^2.
    base = jnp.ones((100, 2), jnp.float32)
    x0 = 2.0 * base + jax.random.normal(kx0, (100, 2), jnp.float32)
    x1 = -2.0 * base + jax.random.normal(kx1, (100, 2), jnp.float32)
    x = jnp.concatenate([x0, x1], axis=0)          # (200, 2)

    w1, b1, w2, b2 = init_params(kp)

    out = net_forward(x, w1, b1, w2, b2)
    out = jax.block_until_ready(out)

    # Reference check in plain JAX (matches the PyTorch module's forward).
    h_ref = jnp.maximum(x @ w1 + b1, 0.0)
    ref = jax.nn.softmax(h_ref @ w2 + b2, axis=1)
    assert out.shape == x.shape
    assert jnp.allclose(out, ref, atol=1e-5, rtol=1e-4)
    assert jnp.allclose(jnp.sum(out, axis=1), 1.0, atol=1e-6)

    print("KERNEL_OK")
</pallas_src>

<mosaic_0001>
module attributes {stable_mosaic.version = 11 : i64} {
  func.func @net_kernel(%arg0: i32, %arg1: memref<16x8xf32, #tpu.memory_space<vmem>>, %arg2: memref<2x200xf32, #tpu.memory_space<vmem>>, %arg3: memref<2x200xf32, #tpu.memory_space<vmem>>) attributes {dimension_semantics = [#tpu.dimension_semantics<arbitrary>], iteration_bounds = array<i64: 1>, scalar_prefetch = 0 : i64, scratch_operands = 0 : i64, tpu.core_type = #tpu.core_type<tc>, window_params = [{pipeline_mode = #tpu.pipeline_mode<synchronous>, transform_indices = @transform_0, window_bounds = array<i64: 16, 8>}, {transform_indices = @transform_1, window_bounds = array<i64: 2, 200>}, {transform_indices = @transform_2, window_bounds = array<i64: 2, 200>}]} {
    %c0 = arith.constant 0 : index
    %c0_0 = arith.constant 0 : index
    %0 = vector.load %arg1[%c0, %c0_0] : memref<16x8xf32, #tpu.memory_space<vmem>>, vector<16x1xf32>
    %c0_1 = arith.constant 0 : index
    %c1 = arith.constant 1 : index
    %1 = vector.load %arg1[%c0_1, %c1] : memref<16x8xf32, #tpu.memory_space<vmem>>, vector<16x1xf32>
    %c0_2 = arith.constant 0 : index
    %c2 = arith.constant 2 : index
    %2 = vector.load %arg1[%c0_2, %c2] : memref<16x8xf32, #tpu.memory_space<vmem>>, vector<16x1xf32>
    %c0_3 = arith.constant 0 : index
    %c3 = arith.constant 3 : index
    %3 = vector.load %arg1[%c0_3, %c3] : memref<16x8xf32, #tpu.memory_space<vmem>>, vector<16x1xf32>
    %c0_4 = arith.constant 0 : index
    %c4 = arith.constant 4 : index
    %4 = vector.load %arg1[%c0_4, %c4] : memref<16x8xf32, #tpu.memory_space<vmem>>, vector<1x1xf32>
    %c0_5 = arith.constant 0 : index
    %c0_6 = arith.constant 0 : index
    %5 = vector.load %arg2[%c0_5, %c0_6] : memref<2x200xf32, #tpu.memory_space<vmem>>, vector<1x200xf32>
    %c1_7 = arith.constant 1 : index
    %c0_8 = arith.constant 0 : index
    %6 = vector.load %arg2[%c1_7, %c0_8] : memref<2x200xf32, #tpu.memory_space<vmem>>, vector<1x200xf32>
    %7 = vector.broadcast %0 : vector<16x1xf32> to vector<16x200xf32>
    %8 = vector.broadcast %5 : vector<1x200xf32> to vector<16x200xf32>
    %9 = arith.mulf %7, %8 : vector<16x200xf32>
    %10 = vector.broadcast %1 : vector<16x1xf32> to vector<16x200xf32>
    %11 = vector.broadcast %6 : vector<1x200xf32> to vector<16x200xf32>
    %12 = arith.mulf %10, %11 : vector<16x200xf32>
    %13 = arith.addf %9, %12 : vector<16x200xf32>
    %14 = vector.broadcast %2 : vector<16x1xf32> to vector<16x200xf32>
    %15 = arith.addf %13, %14 : vector<16x200xf32>
    %cst = arith.constant 0.000000e+00 : f32
    %16 = vector.broadcast %cst : f32 to vector<16x200xf32>
    %17 = arith.maximumf %15, %16 : vector<16x200xf32>
    %18 = vector.broadcast %3 : vector<16x1xf32> to vector<16x200xf32>
    %19 = arith.mulf %18, %17 : vector<16x200xf32>
    %cst_9 = arith.constant dense<0.000000e+00> : vector<200xf32>
    %20 = vector.multi_reduction <add>, %19, %cst_9 [0] : vector<16x200xf32> to vector<200xf32>
    %21 = vector.shape_cast %20 : vector<200xf32> to vector<1x200xf32>
    %22 = vector.broadcast %4 : vector<1x1xf32> to vector<1x200xf32>
    %23 = arith.addf %21, %22 : vector<1x200xf32>
    %cst_10 = arith.constant 5.000000e-01 : f32
    %24 = vector.broadcast %cst_10 : f32 to vector<1x200xf32>
    %25 = arith.mulf %24, %23 : vector<1x200xf32>
    %26 = math.tanh %25 : vector<1x200xf32>
    %cst_11 = arith.constant 1.000000e+00 : f32
    %27 = vector.broadcast %cst_11 : f32 to vector<1x200xf32>
    %28 = arith.addf %26, %27 : vector<1x200xf32>
    %cst_12 = arith.constant 5.000000e-01 : f32
    %29 = vector.broadcast %cst_12 : f32 to vector<1x200xf32>
    %30 = arith.mulf %29, %28 : vector<1x200xf32>
    %c0_13 = arith.constant 0 : index
    %c0_14 = arith.constant 0 : index
    %31 = vector.load %arg3[%c0_13, %c0_14] : memref<2x200xf32, #tpu.memory_space<vmem>>, vector<1x200xf32>
    tpu.vector_store %arg3[%c0_13, %c0_14], %30 {strides = array<i32>} : memref<2x200xf32, #tpu.memory_space<vmem>>, vector<1x200xf32>,
    %cst_15 = arith.constant 1.000000e+00 : f32
    %32 = vector.broadcast %cst_15 : f32 to vector<1x200xf32>
    %33 = arith.subf %32, %30 : vector<1x200xf32>
    %c1_16 = arith.constant 1 : index
    %c0_17 = arith.constant 0 : index
    %34 = vector.load %arg3[%c1_16, %c0_17] : memref<2x200xf32, #tpu.memory_space<vmem>>, vector<1x200xf32>
    tpu.vector_store %arg3[%c1_16, %c0_17], %33 {strides = array<i32>} : memref<2x200xf32, #tpu.memory_space<vmem>>, vector<1x200xf32>,
    return
  }
  func.func @transform_0(%arg0: i32) -> (i32, i32) {
    %c0_i32 = arith.constant 0 : i32
    %c0_i32_0 = arith.constant 0 : i32
    %c0_i32_1 = arith.constant 0 : i32
    return %c0_i32, %c0_i32_0 : i32, i32
  }
  func.func @transform_1(%arg0: i32) -> (i32, i32) {
    %c0_i32 = arith.constant 0 : i32
    %c0_i32_0 = arith.constant 0 : i32
    return %c0_i32, %arg0 : i32, i32
  }
  func.func @transform_2(%arg0: i32) -> (i32, i32) {
    %c0_i32 = arith.constant 0 : i32
    %c0_i32_0 = arith.constant 0 : i32
    return %c0_i32, %arg0 : i32, i32
  }
}

</mosaic_0001>

<llo_original>
// kernel: tpu_custom_call.1
$region0: #{tpu_custom_call.1}
  #allocation0 [shape = 'u32[]', space=smem, size = 0x4, offset = 0x4, fixed_abs, tag = 'smem constant byte address 0x4 - core index']
  #allocation1 [shape = 'u32[144,128]{1,0:T(1,128)}', space=vmem, size = 0x12000, scoped, tag = 'internal scratch']
  %s0 = inlined_call_operand.vmem [shape: f32[16,8], index: 0, kind: input, shape index: {}]
  %s1 = inlined_call_operand.vmem [shape: f32[2,200], index: 1, kind: input, shape index: {}]
  %s2 = inlined_call_operand.hbm [shape: f32[2,200], index: 2, kind: output, shape index: {}]
  %s3 = sld [smem:[#allocation0]]
  $region18: #{tpu_custom_call.1} parent=0
    _
  %s5 = ssub.s32 1, %s3
  %s6 = scalar_select 0, %s5, %s3
  $region1: #{tpu_custom_call.1} parent=0
    #allocation2 [shape = 'u8[2048]{0}', space=vmem, size = 0x800, scoped, tag = 'output window, operand 0, single buffered']
    #allocation3 [shape = 's32[1]{0}', space=sflag, size = 0x4, scoped, tag = 'scoped memory for tpu_custom_call.1']
    %7 = vsyncpa [#allocation3], 0
    // Predicated region
    $region2: #{tpu_custom_call.1} parent=1 // pred_check
      _
    $region3: #{tpu_custom_call.1} parent=1 // pred_check_branch
      %9 = sbr.rel (0) target = $region5
    $region4: #{tpu_custom_call.1} parent=1 // pred_region
      _
    $region5: #{tpu_custom_call.1} parent=1 // pred_fallthru
      _
    // Predicated region
    $region6: #{tpu_custom_call.1} parent=1 // pred_check
      _
    $region7: #{tpu_custom_call.1} parent=1 // pred_check_branch
      %11 = sbr.rel (0) target = $region9
    $region8: #{tpu_custom_call.1} parent=1 // pred_region
      _
    $region9: #{tpu_custom_call.1} parent=1 // pred_fallthru
      _
    %v12 = vld [vmem:[%s0] sm:$0xff]
    %v13 = vld [vmem:[%s0 + $0x8] sm:$0xff]
    %v14 = vld [vmem:[%s0] sm:$0x1]
    %v15 = vld [vmem:[%s1] ss:$2 sm:$0x3]
    %s16 = scalar_lea.vmem %s1, 1
    %v17 = vld [vmem:[%s16] ss:$2 sm:$0x3]
    %19 = vset.pattern.permute.xlu0 0
    %20 = vperm.xlu0 %19, %v12
    %v21 = vpop.permute.xlu0 %20
    %24 = vset.pattern.permute.xlu0 0
    %25 = vperm.xlu0 %24, %v13
    %v26 = vpop.permute.xlu0 %25
    %v29 = vlaneseq
    %v30 = vshrl.u32 %v29, 7
    %v31 = vsub.s32 0, %v30
    %v32 = vrot.slane %v15, %v31
    %v33 = vlaneseq
    %v34 = vshrl.u32 %v33, 7
    %v35 = vsub.s32 1, %v34
    %v36 = vrot.slane %v15, %v35
    %v39 = vmul.f32 %v21, %v32
    %v40 = vmul.f32 %v21, %v36
    %v41 = vmul.f32 %v26, %v32
    %v42 = vmul.f32 %v26, %v36
    %43 = vset.pattern.permute.xlu0 1
    %44 = vperm.xlu0 %43, %v12
    %v45 = vpop.permute.xlu0 %44
    %47 = vset.pattern.permute.xlu0 1
    %48 = vperm.xlu0 %47, %v13
    %v49 = vpop.permute.xlu0 %48
    %v52 = vlaneseq
    %v53 = vshrl.u32 %v52, 7
    %v54 = vsub.s32 0, %v53
    %v55 = vrot.slane %v17, %v54
    %v56 = vlaneseq
    %v57 = vshrl.u32 %v56, 7
    %v58 = vsub.s32 1, %v57
    %v59 = vrot.slane %v17, %v58
    %v62 = vmul.f32 %v45, %v55
    %v63 = vmul.f32 %v45, %v59
    %v64 = vmul.f32 %v49, %v55
    %v65 = vmul.f32 %v49, %v59
    %v66 = vadd.f32 %v39, %v62
    %v67 = vadd.f32 %v40, %v63
    %v68 = vadd.f32 %v41, %v64
    %v69 = vadd.f32 %v42, %v65
    %70 = vset.pattern.permute.xlu0 2
    %71 = vperm.xlu0 %70, %v12
    %v72 = vpop.permute.xlu0 %71
    %74 = vset.pattern.permute.xlu0 2
    %75 = vperm.xlu0 %74, %v13
    %v76 = vpop.permute.xlu0 %75
    %v78 = vadd.f32 %v66, %v72
    %v79 = vadd.f32 %v67, %v72
    %v80 = vadd.f32 %v68, %v76
    %v81 = vadd.f32 %v69, %v76
    %v82 = vmax.f32 %v78, 0.0
    %v83 = vmax.f32 %v79, 0.0
    %v84 = vmax.f32 %v80, 0.0
    %v85 = vmax.f32 %v81, 0.0
    %86 = vset.pattern.permute.xlu0 3
    %87 = vperm.xlu0 %86, %v12
    %v88 = vpop.permute.xlu0 %87
    %90 = vset.pattern.permute.xlu0 3
    %91 = vperm.xlu0 %90, %v13
    %v92 = vpop.permute.xlu0 %91
    %v94 = vmul.f32 %v88, %v82
    %v95 = vmul.f32 %v88, %v83
    %v96 = vmul.f32 %v92, %v84
    %v97 = vmul.f32 %v92, %v85
    %v98 = vadd.f32 %v94, %v96
    %v99 = vrot.slane %v98, 4
    %v100 = vadd.f32 %v98, %v99
    %v101 = vrot.slane %v100, 2
    %v102 = vadd.f32 %v100, %v101
    %v103 = vrot.slane %v102, 1
    %v104 = vadd.f32 %v102, %v103
    %vm105 = vcmask 588800
    %v106 = vsel %vm105, %v95, 0.0
    %v107 = vsel %vm105, %v97, 0.0
    %v108 = vadd.f32 %v106, %v107
    %v109 = vrot.slane %v108, 4
    %v110 = vadd.f32 %v108, %v109
    %v111 = vrot.slane %v110, 2
    %v112 = vadd.f32 %v110, %v111
    %v113 = vrot.slane %v112, 1
    %v114 = vadd.f32 %v112, %v113
    %116 = vset.pattern.permute.xlu0 4
    %117 = vperm.xlu0 %116, %v14
    %v118 = vpop.permute.xlu0 %117
    %v120 = vadd.f32 %v104, %v118
    %v121 = vadd.f32 %v114, %v118
    %v122 = vmul.f32 %v120, 0.5
    %v123 = vmul.f32 %v121, 0.5
    %v124 = vtanh.pop %v122
    %v125 = vtanh.pop %v123
    %v126 = vadd.f32 %v124, 1.0
    %v127 = vadd.f32 %v125, 1.0
    %v128 = vmul.f32 %v126, 0.5
    %v129 = vmul.f32 %v127, 0.5
    %v132 = vcombine.low %v128, %v129
    %v134 = vunpack.c.l.s4 1966171168
    %v135 = vunpack.c.0.s8 %v134
    %v136 = vlaneseq
    %v137 = vshrl.u32 %v136, 7
    %v138 = vsub.s32 %v135, %v137
    %v139 = vrot.slane %v132, %v138
    %v141 = vunpack.c.l.s4 1966171168
    %v142 = vunpack.c.0.s8 %v141
    %v143 = vlaneseq
    %v144 = vshrl.u32 %v143, 7
    %v145 = vsub.s32 %v142, %v144
    %v146 = vrot.slane %v139, %v145
    %v148 = vlaneseq
    %vm149 = vcmp.ge.s32.totalorder %v148, 0
    %vm150 = vcmp.lt.s32.totalorder %v148, 200
    %vm151 = vmand %vm149, %vm150
    %152 = vst.msk [vmem:[#allocation2] ss:$2 sm:$0x3] %vm151, %v146
    %v153 = vsub.f32 1.0, %v128
    %v154 = vsub.f32 1.0, %v129
    %v157 = vcombine.low %v153, %v154
    %v159 = vunpack.c.l.s4 1966171168
    %v160 = vunpack.c.0.s8 %v159
    %v161 = vlaneseq
    %v162 = vshrl.u32 %v161, 7
    %v163 = vsub.s32 %v160, %v162
    %v164 = vrot.slane %v157, %v163
    %v166 = vunpack.c.l.s4 1966171168
    %v167 = vunpack.c.0.s8 %v166
    %v168 = vlaneseq
    %v169 = vshrl.u32 %v168, 7
    %v170 = vsub.s32 %v167, %v169
    %v171 = vrot.slane %v164, %v170
    %s173 = scalar_lea.vmem [#allocation2], 1
    %174 = vst.msk [vmem:[%s173] ss:$2 sm:$0x3] %vm151, %v171
    // Predicated region
    $region10: #{tpu_custom_call.1} parent=1 // pred_check
      _
    $region11: #{tpu_custom_call.1} parent=1 // pred_check_branch
      %176 = sbr.rel (0) target = $region13
    $region12: #{tpu_custom_call.1} parent=1 // pred_region
      %s178 = ssub.s32 64, 64
      %179 = vsyncadd [#allocation3], %s178
      %s181 = sshll.u32 [#allocation2], 4
      %s182 = int_to_ptr.vmem [resolvable:$true] %s181
      %184 = dma.vmem_to_hbm [thread:$0]  %s182, 64, %s2, [#allocation3]
    $region13: #{tpu_custom_call.1} parent=1 // pred_fallthru
      _
    // Predicated region
    $region14: #{tpu_custom_call.1} parent=1 // pred_check
      _
    $region15: #{tpu_custom_call.1} parent=1 // pred_check_branch
      %186 = sbr.rel (0) target = $region17
    $region16: #{tpu_custom_call.1} parent=1 // pred_region
      %187 = dma.done [#allocation3], 64
    $region17: #{tpu_custom_call.1} parent=1 // pred_fallthru
      _
    %188 = vsyncpa [#allocation3], 1

</llo_original>
